<compile_context>
chip_gen: v5e
topology: v5e:2x2
jax: 0.10.0
libtpu: 0.0.40
codegen_flags: <defaults>
</compile_context>

<pallas_src>
import math

import jax
import jax.numpy as jnp
from jax.experimental import pallas as pl
from jax.experimental.pallas import tpu as pltpu


def _round_up(x, m):
    return ((x + m - 1) // m) * m


def _cdiv(a, b):
    return (a + b - 1) // b


def _vmem_capacity_bytes():
    try:
        return max(int(pltpu.get_tpu_info().vmem_capacity_bytes), 32 << 20)
    except Exception:
        return 64 << 20  # conservative default (v7x per-TC VMEM)


# --------------------------------------------------------------------------- #
# Kernel
# --------------------------------------------------------------------------- #
def _make_kernel(resident, use_scratch):
    """relu(x @ W1 + b1) @ W2 + b2, streamed over d_ff chunks (grid axis 1).

    Weights arrive pre-chunked: W1 (n_k, dm_p, tk), b1 (n_k, 1, tk),
    W2 (n_k, tk, dm_p), b2 (1, dm_p).  In resident mode the kernel sees the
    whole chunked array (constant index map) and picks chunk k itself; in
    streaming mode each grid step receives a single (1, ., .) chunk.
    """

    def kernel(x_ref, w1_ref, b1_ref, w2_ref, b2_ref, o_ref, *scratch):
        acc_ref = scratch[0] if use_scratch else o_ref
        k = pl.program_id(1)
        ck = k if resident else 0

        @pl.when(k == 0)
        def _init():
            acc_ref[...] = jnp.zeros_like(acc_ref)

        # First matmul (MXU) with f32 accumulation; bias + ReLU on the VPU.
        h = jnp.dot(x_ref[...].astype(w1_ref.dtype), w1_ref[ck],
                    preferred_element_type=jnp.float32)
        h = jnp.maximum(h + b1_ref[ck], 0.0)

        # Second matmul: accumulate this d_ff chunk's contribution in f32.
        acc_ref[...] += jnp.dot(h.astype(w2_ref.dtype), w2_ref[ck],
                                preferred_element_type=jnp.float32)

        @pl.when(k == pl.num_programs(1) - 1)
        def _finalize():
            if use_scratch:
                o_ref[...] = (acc_ref[...] + b2_ref[...]).astype(o_ref.dtype)
            else:
                o_ref[...] += b2_ref[...]   # output block *is* the f32 accumulator

    return kernel


# --------------------------------------------------------------------------- #
# Planning (shape/VMEM driven, done once per weight shape)
# --------------------------------------------------------------------------- #
def _plan_ffn(d_model, d_ff, compute_dtype=jnp.bfloat16):
    csz = jnp.dtype(compute_dtype).itemsize
    dm_p = _round_up(d_model, 128)
    dff_p = _round_up(d_ff, 128)
    cap = _vmem_capacity_bytes()
    budget = int(cap * 0.85)       # headroom: ~54 MiB on v7x, ~109 MiB on v5e/v6e

    def footprint(tk, resident, tm):
        dff_pad = _round_up(dff_p, tk)
        acc = tm * dm_p * 4                       # f32 accumulator / f32 out block
        h = tm * tk * (4 + csz)                   # internal f32 hidden + narrow copy
        xo = 2 * tm * dm_p * (4 + 4)              # double-buffered x / out tiles (f32 worst case)
        if resident:                               # assume pipeline double-buffers
            w = 2 * (2 * dm_p * dff_pad * csz + dff_pad * 4) + 2 * dm_p * 4
        else:
            w = 2 * (2 * dm_p * tk * csz + tk * 4) + 2 * dm_p * 4
        return w + xo + acc + h + (2 << 20)

    tk_candidates = [c for c in (2048, 1024, 512, 256, 128) if c <= max(dff_p, 128)]

    def pick_tk(resident, tm):
        fitting = [tk for tk in tk_candidates if footprint(tk, resident, tm) <= budget]
        if not fitting:
            return None
        # Prefer large chunks, but cap padding waste at ~25%.
        low_waste = [tk for tk in fitting if _round_up(dff_p, tk) <= dff_p * 1.25]
        return (low_waste or fitting)[0]

    # Priorities: resident weights (biggest lever) > large token tile > large tk.
    for resident in (True, False):
        for tm_cap in (1024, 512, 256):
            tk = pick_tk(resident, tm_cap)
            if tk is not None:
                dff_pad = _round_up(dff_p, tk)
                return dict(dm_p=dm_p, dff_pad=dff_pad, tk=tk, n_k=dff_pad // tk,
                            resident=resident, tm_cap=tm_cap, budget=budget,
                            compute_dtype=compute_dtype)

    tk = 128                                       # last-resort fallback
    dff_pad = _round_up(dff_p, tk)
    return dict(dm_p=dm_p, dff_pad=dff_pad, tk=tk, n_k=dff_pad // tk,
                resident=False, tm_cap=128, budget=budget,
                compute_dtype=compute_dtype)


def _prepare_ffn_params(w1, b1, w2, b2, plan):
    """Pad/cast/chunk the weights ONCE (hoisted out of the per-call hot path).

    Expects w1 (d_model, d_ff), b1 (d_ff,), w2 (d_ff, d_model), b2 (d_model,)
    (i.e. transposed relative to nn.Linear's (out, in) storage).
    """
    d_model, d_ff = w1.shape
    dm_p, dff_pad = plan["dm_p"], plan["dff_pad"]
    tk, n_k = plan["tk"], plan["n_k"]
    cdt = plan["compute_dtype"]
    f32 = jnp.float32

    w1p = w1.astype(cdt)
    w2p = w2.astype(cdt)
    if (dm_p, dff_pad) != (d_model, d_ff):
        w1p = jnp.zeros((dm_p, dff_pad), cdt).at[:d_model, :d_ff].set(w1p)
        w2p = jnp.zeros((dff_pad, dm_p), cdt).at[:d_ff, :d_model].set(w2p)

    # Pre-chunked layouts: chunk k covers d_ff columns [k*tk, (k+1)*tk).
    w1c = w1p.reshape(dm_p, n_k, tk).swapaxes(0, 1)      # (n_k, dm_p, tk)
    w2c = w2p.reshape(n_k, tk, dm_p)                     # (n_k, tk, dm_p)
    b1p = (jnp.zeros((dff_pad,), f32).at[:d_ff].set(b1.astype(f32))
           .reshape(n_k, 1, tk))                         # (n_k, 1, tk)
    b2p = jnp.zeros((1, dm_p), f32).at[:, :d_model].set(
        b2.reshape(1, -1).astype(f32))                   # (1, dm_p)
    return w1c, b1p, w2c, b2p


# --------------------------------------------------------------------------- #
# pallas_call wrapper
# --------------------------------------------------------------------------- #
def _ffn_apply(x, params, plan, out_dtype):
    w1c, b1p, w2c, b2p = params
    dm_p, dff_pad = plan["dm_p"], plan["dff_pad"]
    tk, n_k = plan["tk"], plan["n_k"]
    resident, tm_cap = plan["resident"], plan["tm_cap"]
    cdt = plan["compute_dtype"]
    csz = jnp.dtype(cdt).itemsize
    xsz = jnp.dtype(x.dtype).itemsize
    osz = jnp.dtype(out_dtype).itemsize

    orig_shape = x.shape
    d_model = orig_shape[-1]
    n_tokens = int(math.prod(orig_shape[:-1])) if len(orig_shape) > 1 else 1
    x2d = x.reshape(n_tokens, d_model)

    # Token tile: >=2 tiles (keeps both v7x TensorCores busy) when enough
    # tokens; minimal 16-row-aligned tile otherwise.
    if n_tokens >= 256:
        n_tiles = max(2, _cdiv(n_tokens, tm_cap))
        tm = min(tm_cap, _round_up(_cdiv(n_tokens, n_tiles), 128))
    else:
        tm = _round_up(max(n_tokens, 8), 16)
    nt_p = _round_up(n_tokens, tm)
    n_token_tiles = nt_p // tm

    if (nt_p, dm_p) != (n_tokens, d_model):
        xp = jnp.zeros((nt_p, dm_p), x.dtype).at[:n_tokens, :d_model].set(x2d)
    else:
        xp = x2d                                    # already lane/sublane aligned: no copy

    use_scratch = jnp.dtype(out_dtype) != jnp.dtype(jnp.float32)
    kernel = _make_kernel(resident, use_scratch)

    if resident:   # whole chunked weight arrays stay in VMEM (never re-DMA'd)
        w1_spec = pl.BlockSpec((n_k, dm_p, tk), lambda i, k: (0, 0, 0))
        b1_spec = pl.BlockSpec((n_k, 1, tk), lambda i, k: (0, 0, 0))
        w2_spec = pl.BlockSpec((n_k, tk, dm_p), lambda i, k: (0, 0, 0))
    else:          # stream one tk-wide chunk per grid step
        w1_spec = pl.BlockSpec((1, dm_p, tk), lambda i, k: (k, 0, 0))
        b1_spec = pl.BlockSpec((1, 1, tk), lambda i, k: (k, 0, 0))
        w2_spec = pl.BlockSpec((1, tk, dm_p), lambda i, k: (k, 0, 0))

    # VMEM limit from the actual tile footprint (internal f32 hidden included).
    if resident:
        w_bytes = 2 * (w1c.size + w2c.size) * csz + 2 * (b1p.size + b2p.size) * 4
    else:
        w_bytes = 2 * (2 * dm_p * tk * csz + tk * 4) + 2 * dm_p * 4
    need = (w_bytes + 2 * tm * dm_p * (xsz + osz) + tm * dm_p * 4
            + tm * tk * (4 + csz) + (2 << 20))
    vmem_limit = int(max(32 << 20, min(plan["budget"], need + (4 << 20))))

    weight_hbm = (w1c.size + w2c.size) * csz + (b1p.size + b2p.size) * 4
    reread = 1 if resident else n_token_tiles
    cost = pl.CostEstimate(
        flops=4 * nt_p * dm_p * dff_pad,            # two matmuls, 2 flops / MAC
        transcendentals=0,
        bytes_accessed=int(xp.size * xsz + weight_hbm * reread + nt_p * dm_p * osz),
    )

    scratch = [pltpu.VMEM((tm, dm_p), jnp.float32)] if use_scratch else []

    out_p = pl.pallas_call(
        kernel,
        out_shape=jax.ShapeDtypeStruct((nt_p, dm_p), out_dtype),
        grid_spec=pltpu.PrefetchScalarGridSpec(
            num_scalar_prefetch=0,
            grid=(n_token_tiles, n_k),
            in_specs=[
                pl.BlockSpec((tm, dm_p), lambda i, k: (i, 0)),   # x token tile
                w1_spec, b1_spec, w2_spec,
                pl.BlockSpec((1, dm_p), lambda i, k: (0, 0)),    # b2 (resident)
            ],
            out_specs=pl.BlockSpec((tm, dm_p), lambda i, k: (i, 0)),
            scratch_shapes=scratch,
        ),
        compiler_params=pltpu.CompilerParams(
            dimension_semantics=("parallel", "arbitrary"),
            vmem_limit_bytes=vmem_limit,
        ),
        cost_estimate=cost,
    )(xp, w1c, b1p, w2c, b2p)

    out = out_p
    if (nt_p, dm_p) != (n_tokens, d_model):
        out = out[:n_tokens, :d_model]
    return out.reshape(orig_shape)


# --------------------------------------------------------------------------- #
# Public API
# --------------------------------------------------------------------------- #
def make_position_wise_feed_forward(w1, b1, w2, b2, *, compute_dtype=jnp.bfloat16):
    """Build a jitted FFN closure. Weight pad/cast/chunking happens once here."""
    d_model, d_ff = w1.shape
    plan = _plan_ffn(d_model, d_ff, compute_dtype)
    params = _prepare_ffn_params(w1, b1, w2, b2, plan)

    apply_fn = jax.jit(lambda p, x: _ffn_apply(x, p, plan, x.dtype))
    return lambda x: apply_fn(params, x)


def position_wise_feed_forward(x, w1, b1, w2, b2, *, compute_dtype=jnp.bfloat16):
    """One-shot convenience wrapper (re-pads/casts the weights every call)."""
    plan = _plan_ffn(w1.shape[0], w1.shape[1], compute_dtype)
    params = _prepare_ffn_params(w1, b1, w2, b2, plan)
    return _ffn_apply(x, params, plan, x.dtype)


def init_params(key, d_model, d_ff, dtype=jnp.float32):
    # Deterministic init mimicking nn.Linear's uniform(-1/sqrt(fan_in), ...).
    k1, k2, k3, k4 = jax.random.split(key, 4)
    lim1 = 1.0 / (d_model ** 0.5)
    lim2 = 1.0 / (d_ff ** 0.5)
    w1 = jax.random.uniform(k1, (d_model, d_ff), dtype, -lim1, lim1)
    b1 = jax.random.uniform(k2, (d_ff,), dtype, -lim1, lim1)
    w2 = jax.random.uniform(k3, (d_ff, d_model), dtype, -lim2, lim2)
    b2 = jax.random.uniform(k4, (d_model,), dtype, -lim2, lim2)
    return w1, b1, w2, b2


if __name__ == "__main__":
    B, S, d_model, d_ff = 2, 8, 32, 64
    key = jax.random.PRNGKey(0)
    kx, kp = jax.random.split(key)

    x = jax.random.normal(kx, (B, S, d_model), jnp.float32)
    w1, b1, w2, b2 = init_params(kp, d_model, d_ff)

    ffn = make_position_wise_feed_forward(w1, b1, w2, b2)   # pad/cast hoisted
    y = jax.block_until_ready(ffn(x))

    # Pure-JAX f32 reference (kernel uses bf16 MXU inputs with f32 accumulation).
    ref = jnp.maximum(x @ w1 + b1, 0.0) @ w2 + b2
    assert y.shape == (B, S, d_model)
    err = float(jnp.max(jnp.abs(y - ref)))
    assert err < 2e-2, err

    print("KERNEL_OK")
</pallas_src>

<mosaic_0001>
module attributes {stable_mosaic.version = 11 : i64} {
  func.func @kernel(%arg0: i32, %arg1: i32, %arg2: memref<16x128xf32, #tpu.memory_space<vmem>>, %arg3: memref<1x128x128xbf16, #tpu.memory_space<vmem>>, %arg4: memref<1x1x128xf32, #tpu.memory_space<vmem>>, %arg5: memref<1x128x128xbf16, #tpu.memory_space<vmem>>, %arg6: memref<1x128xf32, #tpu.memory_space<vmem>>, %arg7: memref<16x128xf32, #tpu.memory_space<vmem>>) attributes {dimension_semantics = [#tpu.dimension_semantics<parallel>, #tpu.dimension_semantics<arbitrary>], iteration_bounds = array<i64: 1, 1>, scalar_prefetch = 0 : i64, scratch_operands = 0 : i64, tpu.core_type = #tpu.core_type<tc>, window_params = [{transform_indices = @transform_0, window_bounds = array<i64: 16, 128>}, {pipeline_mode = #tpu.pipeline_mode<synchronous>, transform_indices = @transform_1, window_bounds = array<i64: 1, 128, 128>}, {pipeline_mode = #tpu.pipeline_mode<synchronous>, transform_indices = @transform_2, window_bounds = array<i64: 1, 1, 128>}, {pipeline_mode = #tpu.pipeline_mode<synchronous>, transform_indices = @transform_3, window_bounds = array<i64: 1, 128, 128>}, {pipeline_mode = #tpu.pipeline_mode<synchronous>, transform_indices = @transform_4, window_bounds = array<i64: 1, 128>}, {transform_indices = @transform_5, window_bounds = array<i64: 16, 128>}]} {
    %c0_i32 = arith.constant 0 : i32
    %0 = arith.cmpi eq, %arg1, %c0_i32 : i32
    %1 = arith.extui %0 : i1 to i32
    %c0_i32_0 = arith.constant 0 : i32
    %2 = arith.cmpi ne, %1, %c0_i32_0 : i32
    scf.if %2 {
      %cst_16 = arith.constant 0.000000e+00 : f32
      %27 = vector.broadcast %cst_16 : f32 to vector<16x128xf32>
      %c0_17 = arith.constant 0 : index
      %c0_18 = arith.constant 0 : index
      %28 = vector.load %arg7[%c0_17, %c0_18] : memref<16x128xf32, #tpu.memory_space<vmem>>, vector<16x128xf32>
      tpu.vector_store %arg7[%c0_17, %c0_18], %27 {strides = array<i32>} : memref<16x128xf32, #tpu.memory_space<vmem>>, vector<16x128xf32>,
    } else {
    }
    %c0 = arith.constant 0 : index
    %c0_1 = arith.constant 0 : index
    %3 = vector.load %arg2[%c0, %c0_1] : memref<16x128xf32, #tpu.memory_space<vmem>>, vector<16x128xf32>
    %4 = arith.truncf %3 : vector<16x128xf32> to vector<16x128xbf16>
    %5 = arith.index_cast %arg1 : i32 to index
    %c0_2 = arith.constant 0 : index
    %c0_3 = arith.constant 0 : index
    %6 = vector.load %arg3[%5, %c0_2, %c0_3] : memref<1x128x128xbf16, #tpu.memory_space<vmem>>, vector<1x128x128xbf16>
    %7 = vector.shape_cast %6 : vector<1x128x128xbf16> to vector<128x128xbf16>
    %cst = arith.constant dense<0.000000e+00> : vector<16x128xf32>
    %8 = tpu.matmul %4, %7, %cst {dimension_numbers = #tpu.dot_dimension_numbers<[1], [0], [0], [1], [0, 0, 1, 1], [], []>} : vector<16x128xbf16>, vector<128x128xbf16>, vector<16x128xf32> -> vector<16x128xf32>
    %9 = arith.index_cast %arg1 : i32 to index
    %c0_4 = arith.constant 0 : index
    %c0_5 = arith.constant 0 : index
    %10 = vector.load %arg4[%9, %c0_4, %c0_5] : memref<1x1x128xf32, #tpu.memory_space<vmem>>, vector<1x1x128xf32>
    %11 = vector.shape_cast %10 : vector<1x1x128xf32> to vector<1x128xf32>
    %12 = vector.broadcast %11 : vector<1x128xf32> to vector<16x128xf32>
    %13 = arith.addf %8, %12 : vector<16x128xf32>
    %cst_6 = arith.constant 0.000000e+00 : f32
    %14 = vector.broadcast %cst_6 : f32 to vector<16x128xf32>
    %15 = arith.maximumf %13, %14 : vector<16x128xf32>
    %c0_7 = arith.constant 0 : index
    %c0_8 = arith.constant 0 : index
    %16 = vector.load %arg7[%c0_7, %c0_8] : memref<16x128xf32, #tpu.memory_space<vmem>>, vector<16x128xf32>
    %17 = arith.truncf %15 : vector<16x128xf32> to vector<16x128xbf16>
    %18 = arith.index_cast %arg1 : i32 to index
    %c0_9 = arith.constant 0 : index
    %c0_10 = arith.constant 0 : index
    %19 = vector.load %arg5[%18, %c0_9, %c0_10] : memref<1x128x128xbf16, #tpu.memory_space<vmem>>, vector<1x128x128xbf16>
    %20 = vector.shape_cast %19 : vector<1x128x128xbf16> to vector<128x128xbf16>
    %cst_11 = arith.constant dense<0.000000e+00> : vector<16x128xf32>
    %21 = tpu.matmul %17, %20, %cst_11 {dimension_numbers = #tpu.dot_dimension_numbers<[1], [0], [0], [1], [0, 0, 1, 1], [], []>} : vector<16x128xbf16>, vector<128x128xbf16>, vector<16x128xf32> -> vector<16x128xf32>
    %22 = arith.addf %16, %21 : vector<16x128xf32>
    %c0_12 = arith.constant 0 : index
    %c0_13 = arith.constant 0 : index
    %23 = vector.load %arg7[%c0_12, %c0_13] : memref<16x128xf32, #tpu.memory_space<vmem>>, vector<16x128xf32>
    tpu.vector_store %arg7[%c0_12, %c0_13], %22 {strides = array<i32>} : memref<16x128xf32, #tpu.memory_space<vmem>>, vector<16x128xf32>,
    %c0_i32_14 = arith.constant 0 : i32
    %24 = arith.cmpi eq, %arg1, %c0_i32_14 : i32
    %25 = arith.extui %24 : i1 to i32
    %c0_i32_15 = arith.constant 0 : i32
    %26 = arith.cmpi ne, %25, %c0_i32_15 : i32
    scf.if %26 {
      %c0_16 = arith.constant 0 : index
      %c0_17 = arith.constant 0 : index
      %27 = vector.load %arg7[%c0_16, %c0_17] : memref<16x128xf32, #tpu.memory_space<vmem>>, vector<16x128xf32>
      %c0_18 = arith.constant 0 : index
      %c0_19 = arith.constant 0 : index
      %28 = vector.load %arg6[%c0_18, %c0_19] : memref<1x128xf32, #tpu.memory_space<vmem>>, vector<1x128xf32>
      %29 = vector.broadcast %28 : vector<1x128xf32> to vector<16x128xf32>
      %30 = arith.addf %27, %29 : vector<16x128xf32>
      %c0_20 = arith.constant 0 : index
      %c0_21 = arith.constant 0 : index
      %31 = vector.load %arg7[%c0_20, %c0_21] : memref<16x128xf32, #tpu.memory_space<vmem>>, vector<16x128xf32>
      tpu.vector_store %arg7[%c0_20, %c0_21], %30 {strides = array<i32>} : memref<16x128xf32, #tpu.memory_space<vmem>>, vector<16x128xf32>,
    } else {
    }
    return
  }
  func.func @transform_0(%arg0: i32, %arg1: i32) -> (i32, i32) {
    %c0_i32 = arith.constant 0 : i32
    %c0_i32_0 = arith.constant 0 : i32
    return %arg0, %c0_i32 : i32, i32
  }
  func.func @transform_1(%arg0: i32, %arg1: i32) -> (i32, i32, i32) {
    %c0_i32 = arith.constant 0 : i32
    %c0_i32_0 = arith.constant 0 : i32
    %c0_i32_1 = arith.constant 0 : i32
    %c0_i32_2 = arith.constant 0 : i32
    return %c0_i32, %c0_i32_0, %c0_i32_1 : i32, i32, i32
  }
  func.func @transform_2(%arg0: i32, %arg1: i32) -> (i32, i32, i32) {
    %c0_i32 = arith.constant 0 : i32
    %c0_i32_0 = arith.constant 0 : i32
    %c0_i32_1 = arith.constant 0 : i32
    %c0_i32_2 = arith.constant 0 : i32
    return %c0_i32, %c0_i32_0, %c0_i32_1 : i32, i32, i32
  }
  func.func @transform_3(%arg0: i32, %arg1: i32) -> (i32, i32, i32) {
    %c0_i32 = arith.constant 0 : i32
    %c0_i32_0 = arith.constant 0 : i32
    %c0_i32_1 = arith.constant 0 : i32
    %c0_i32_2 = arith.constant 0 : i32
    return %c0_i32, %c0_i32_0, %c0_i32_1 : i32, i32, i32
  }
  func.func @transform_4(%arg0: i32, %arg1: i32) -> (i32, i32) {
    %c0_i32 = arith.constant 0 : i32
    %c0_i32_0 = arith.constant 0 : i32
    %c0_i32_1 = arith.constant 0 : i32
    return %c0_i32, %c0_i32_0 : i32, i32
  }
  func.func @transform_5(%arg0: i32, %arg1: i32) -> (i32, i32) {
    %c0_i32 = arith.constant 0 : i32
    %c0_i32_0 = arith.constant 0 : i32
    return %arg0, %c0_i32 : i32, i32
  }
}

</mosaic_0001>

<llo_original>
// kernel: _lambda_.1
$region0: #{_lambda_.1}
  #allocation0 [shape = 'u32[]', space=smem, size = 0x4, offset = 0x4, fixed_abs, tag = 'smem constant byte address 0x4 - core index']
  #allocation1 [shape = 'u32[72,128]{1,0:T(1,128)}', space=vmem, size = 0x9000, scoped, tag = 'internal scratch']
  %s0 = inlined_call_operand.vmem [shape: f32[16,128], index: 0, kind: input, shape index: {}]
  %s1 = inlined_call_operand.vmem [shape: bf16[1,128,128], index: 1, kind: input, shape index: {}]
  %s2 = inlined_call_operand.vmem [shape: f32[1,1,128], index: 2, kind: input, shape index: {}]
  %s3 = inlined_call_operand.hbm [shape: bf16[1,128,128], index: 3, kind: input, shape index: {}]
  %s4 = inlined_call_operand.vmem [shape: f32[1,128], index: 4, kind: input, shape index: {}]
  %s5 = inlined_call_operand.vmem [shape: f32[16,128], index: 5, kind: output, shape index: {}]
  %s6 = sld [smem:[#allocation0]]
  $region42: #{_lambda_.1} parent=0
    _
  %s8 = ssub.s32 1, %s6
  %s9 = scalar_select 0, %s8, %s6
  $region1: #{_lambda_.1} parent=0
    #allocation2 [shape = 'u8[32768]{0}', space=vmem, size = 0x8000, scoped, tag = 'input window, operand 3, single buffered']
    #allocation3 [shape = 's32[1]{0}', space=sflag, size = 0x4, scoped, tag = 'scoped memory for _lambda_.1']
    %10 = vsyncpa [#allocation3], 0
    // Predicated region
    $region2: #{_lambda_.1} parent=1 // pred_check
      _
    $region3: #{_lambda_.1} parent=1 // pred_check_branch
      %12 = sbr.rel (0) target = $region5
    $region4: #{_lambda_.1} parent=1 // pred_region
      _
    $region5: #{_lambda_.1} parent=1 // pred_fallthru
      _
    // Predicated region
    $region6: #{_lambda_.1} parent=1 // pred_check
      _
    $region7: #{_lambda_.1} parent=1 // pred_check_branch
      %14 = sbr.rel (0) target = $region9
    $region8: #{_lambda_.1} parent=1 // pred_region
      _
    $region9: #{_lambda_.1} parent=1 // pred_fallthru
      _
    // Predicated region
    $region10: #{_lambda_.1} parent=1 // pred_check
      _
    $region11: #{_lambda_.1} parent=1 // pred_check_branch
      %16 = sbr.rel (0) target = $region13
    $region12: #{_lambda_.1} parent=1 // pred_region
      _
    $region13: #{_lambda_.1} parent=1 // pred_fallthru
      _
    // Predicated region
    $region14: #{_lambda_.1} parent=1 // pred_check
      _
    $region15: #{_lambda_.1} parent=1 // pred_check_branch
      %18 = sbr.rel (0) target = $region17
    $region16: #{_lambda_.1} parent=1 // pred_region
      %20 = vsyncadd [#allocation3], 0
      %s21 = sshll.u32 %s3, 4
      %s22 = int_to_ptr.hbm [resolvable:$true] %s21
      %s23 = sshll.u32 [#allocation2], 4
      %s24 = int_to_ptr.vmem [resolvable:$true] %s23
      %29 = dma.hbm_to_vmem [thread:$0]  %s22, 1024, %s24, [#allocation3], 64, 64, 4
    $region17: #{_lambda_.1} parent=1 // pred_fallthru
      _
    // Predicated region
    $region18: #{_lambda_.1} parent=1 // pred_check
      _
    $region19: #{_lambda_.1} parent=1 // pred_check_branch
      %31 = sbr.rel (0) target = $region21
    $region20: #{_lambda_.1} parent=1 // pred_region
      _
    $region21: #{_lambda_.1} parent=1 // pred_fallthru
      _
    // Predicated region
    $region22: #{_lambda_.1} parent=1 // pred_check
      _
    $region23: #{_lambda_.1} parent=1 // pred_check_branch
      %33 = sbr.rel (0) target = $region25
    $region24: #{_lambda_.1} parent=1 // pred_region
      %35 = dma.done [#allocation3], 1024
    $region25: #{_lambda_.1} parent=1 // pred_fallthru
      _
    %p36 = scmp.eq.s32.totalorder 0, 0
    // Predicated region
    $region26: #{_lambda_.1} parent=1 // pred_check
      %p37 = pneg %p36
    $region27: #{_lambda_.1} parent=1 // pred_check_branch
      %39 = sbr.rel (%p37) target = $region29
    $region28: #{_lambda_.1} parent=1 // pred_region
      %40 = vst [vmem:[%s5] sm:$0xff] 0.0
      %41 = vst [vmem:[%s5 + $0x8] sm:$0xff] 0.0
    $region29: #{_lambda_.1} parent=1 // pred_fallthru
      _
    %v42 = vld [vmem:[%s0] sm:$0xff]
    %v43 = vld [vmem:[%s0 + $0x8] sm:$0xff]
    %v44 = vpack.c.bf16 %v43, %v42
    %s45 = smul.u32 0, 16
    %s46 = smul.addr %s45, 4
    %s47 = scalar_lea.vmem %s1, %s46
    %v48 = vld [vmem:[%s47] sm:$0xf]
    %v49 = vld [vmem:[%s47 + $0x4] sm:$0xf]
    %v50 = vld [vmem:[%s47 + $0x8] sm:$0xf]
    %v51 = vld [vmem:[%s47 + $0xc] sm:$0xf]
    %v52 = vld [vmem:[%s47 + $0x10] sm:$0xf]
    %v53 = vld [vmem:[%s47 + $0x14] sm:$0xf]
    %v54 = vld [vmem:[%s47 + $0x18] sm:$0xf]
    %v55 = vld [vmem:[%s47 + $0x1c] sm:$0xf]
    %v56 = vld [vmem:[%s47 + $0x20] sm:$0xf]
    %v57 = vld [vmem:[%s47 + $0x24] sm:$0xf]
    %v58 = vld [vmem:[%s47 + $0x28] sm:$0xf]
    %v59 = vld [vmem:[%s47 + $0x2c] sm:$0xf]
    %v60 = vld [vmem:[%s47 + $0x30] sm:$0xf]
    %v61 = vld [vmem:[%s47 + $0x34] sm:$0xf]
    %v62 = vld [vmem:[%s47 + $0x38] sm:$0xf]
    %v63 = vld [vmem:[%s47 + $0x3c] sm:$0xf]
    %v64 = vld [vmem:[%s2] sm:$0x1]
    %v66 = vperm.slane %v64, 0
    %v84 = vunpack.c.l.b16 %v48
    %v85 = vunpack.c.l.b16 %v49
    %v86 = vunpack.c.l.b16 %v50
    %v87 = vunpack.c.l.b16 %v51
    %v88 = vunpack.c.l.b16 %v52
    %v89 = vunpack.c.l.b16 %v53
    %v90 = vunpack.c.l.b16 %v54
    %v91 = vunpack.c.l.b16 %v55
    %v92 = vunpack.c.l.b16 %v56
    %v93 = vunpack.c.l.b16 %v57
    %v94 = vunpack.c.l.b16 %v58
    %v95 = vunpack.c.l.b16 %v59
    %v96 = vunpack.c.l.b16 %v60
    %v97 = vunpack.c.l.b16 %v61
    %v98 = vunpack.c.l.b16 %v62
    %v99 = vunpack.c.l.b16 %v63
    %v100 = vpack.c.b16 %v85, %v84
    %v101 = vpack.c.b16 %v87, %v86
    %v102 = vpack.c.b16 %v89, %v88
    %v103 = vpack.c.b16 %v91, %v90
    %v104 = vpack.c.b16 %v93, %v92
    %v105 = vpack.c.b16 %v95, %v94
    %v106 = vpack.c.b16 %v97, %v96
    %v107 = vpack.c.b16 %v99, %v98
    %116 = vmatpush.bf16.msra.mxu0 %v107
    %117 = vmatpush.bf16.msra.mxu0 %v106
    %118 = vmatpush.bf16.msra.mxu0 %v105
    %119 = vmatpush.bf16.msra.mxu0 %v104
    %120 = vmatpush.bf16.msra.mxu0 %v103
    %121 = vmatpush.bf16.msra.mxu0 %v102
    %122 = vmatpush.bf16.msra.mxu0 %v101
    %123 = vmatpush.bf16.msra.mxu0 %v100
    %124 = vmatmul.bf16.gmra.mxu0 %v44
    %v125 = vpop.f32.mrf.mxu0
    %v126 = vadd.f32 %v66, %v125
    %v127 = vpop.f32.mrf.mxu0
    %v128 = vadd.f32 %v66, %v127
    %129 = vdwg.mxu0
    %v130 = vmax.f32 %v126, 0.0
    %v131 = vmax.f32 %v128, 0.0
    %v132 = vld [vmem:[%s5] sm:$0xff]
    %v133 = vld [vmem:[%s5 + $0x8] sm:$0xff]
    %v134 = vpack.c.bf16 %v131, %v130
    %s135 = smul.addr %s45, 4
    %s136 = scalar_lea.vmem [#allocation2], %s135
    %v137 = vld [vmem:[%s136] sm:$0xf]
    %v138 = vld [vmem:[%s136 + $0x4] sm:$0xf]
    %v139 = vld [vmem:[%s136 + $0x8] sm:$0xf]
    %v140 = vld [vmem:[%s136 + $0xc] sm:$0xf]
    %v141 = vld [vmem:[%s136 + $0x10] sm:$0xf]
    %v142 = vld [vmem:[%s136 + $0x14] sm:$0xf]
    %v143 = vld [vmem:[%s136 + $0x18] sm:$0xf]
    %v144 = vld [vmem:[%s136 + $0x1c] sm:$0xf]
    %v145 = vld [vmem:[%s136 + $0x20] sm:$0xf]
    %v146 = vld [vmem:[%s136 + $0x24] sm:$0xf]
    %v147 = vld [vmem:[%s136 + $0x28] sm:$0xf]
    %v148 = vld [vmem:[%s136 + $0x2c] sm:$0xf]
    %v149 = vld [vmem:[%s136 + $0x30] sm:$0xf]
    %v150 = vld [vmem:[%s136 + $0x34] sm:$0xf]
    %v151 = vld [vmem:[%s136 + $0x38] sm:$0xf]
    %v152 = vld [vmem:[%s136 + $0x3c] sm:$0xf]
    %v169 = vunpack.c.l.b16 %v137
    %v170 = vunpack.c.l.b16 %v138
    %v171 = vunpack.c.l.b16 %v139
    %v172 = vunpack.c.l.b16 %v140
    %v173 = vunpack.c.l.b16 %v141
    %v174 = vunpack.c.l.b16 %v142
    %v175 = vunpack.c.l.b16 %v143
    %v176 = vunpack.c.l.b16 %v144
    %v177 = vunpack.c.l.b16 %v145
    %v178 = vunpack.c.l.b16 %v146
    %v179 = vunpack.c.l.b16 %v147
    %v180 = vunpack.c.l.b16 %v148
    %v181 = vunpack.c.l.b16 %v149
    %v182 = vunpack.c.l.b16 %v150
    %v183 = vunpack.c.l.b16 %v151
    %v184 = vunpack.c.l.b16 %v152
    %v185 = vpack.c.b16 %v170, %v169
    %v186 = vpack.c.b16 %v172, %v171
    %v187 = vpack.c.b16 %v174, %v173
    %v188 = vpack.c.b16 %v176, %v175
    %v189 = vpack.c.b16 %v178, %v177
    %v190 = vpack.c.b16 %v180, %v179
    %v191 = vpack.c.b16 %v182, %v181
    %v192 = vpack.c.b16 %v184, %v183
    %201 = vmatpush.bf16.msra.mxu0 %v192
    %202 = vmatpush.bf16.msra.mxu0 %v191
    %203 = vmatpush.bf16.msra.mxu0 %v190
    %204 = vmatpush.bf16.msra.mxu0 %v189
    %205 = vmatpush.bf16.msra.mxu0 %v188
    %206 = vmatpush.bf16.msra.mxu0 %v187
    %207 = vmatpush.bf16.msra.mxu0 %v186
    %208 = vmatpush.bf16.msra.mxu0 %v185
    %209 = vmatmul.bf16.gmra.mxu0 %v134
    %v210 = vpop.f32.mrf.mxu0
    %v211 = vadd.f32 0.0, %v210
    %v212 = vpop.f32.mrf.mxu0
    %v213 = vadd.f32 0.0, %v212
    %214 = vdwg.mxu0
    %v215 = vadd.f32 %v132, %v211
    %v216 = vadd.f32 %v133, %v213
    %217 = vst [vmem:[%s5] sm:$0xff] %v215
    %218 = vst [vmem:[%s5 + $0x8] sm:$0xff] %v216
    // Predicated region
    $region30: #{_lambda_.1} parent=1 // pred_check
      %p219 = pneg %p36
    $region31: #{_lambda_.1} parent=1 // pred_check_branch
      %221 = sbr.rel (%p219) target = $region33
    $region32: #{_lambda_.1} parent=1 // pred_region
      %v222 = vld [vmem:[%s5] sm:$0xff]
      %v223 = vld [vmem:[%s5 + $0x8] sm:$0xff]
      %v224 = vld [vmem:[%s4] sm:$0x1]
      %v226 = vperm.slane %v224, 0
      %v228 = vadd.f32 %v222, %v226
      %v229 = vadd.f32 %v223, %v226
      %230 = vst [vmem:[%s5] sm:$0xff] %v228
      %231 = vst [vmem:[%s5 + $0x8] sm:$0xff] %v229
    $region33: #{_lambda_.1} parent=1 // pred_fallthru
      _
    // Predicated region
    $region34: #{_lambda_.1} parent=1 // pred_check
      _
    $region35: #{_lambda_.1} parent=1 // pred_check_branch
      %233 = sbr.rel (0) target = $region37
    $region36: #{_lambda_.1} parent=1 // pred_region
      _
    $region37: #{_lambda_.1} parent=1 // pred_fallthru
      _
    // Predicated region
    $region38: #{_lambda_.1} parent=1 // pred_check
      _
    $region39: #{_lambda_.1} parent=1 // pred_check_branch
      %235 = sbr.rel (0) target = $region41
    $region40: #{_lambda_.1} parent=1 // pred_region
      _
    $region41: #{_lambda_.1} parent=1 // pred_fallthru
      _
    %236 = vsyncpa [#allocation3], 1

</llo_original>
